<compile_context>
chip_gen: v6e
topology: v6e:2x2x1
jax: 0.10.0
libtpu: 0.0.40
codegen_flags: <defaults>
</compile_context>

<pallas_src>
import jax
import jax.numpy as jnp
from jax import lax
from jax.experimental import pallas as pl
from jax.experimental.pallas import tpu as pltpu


def _gather_chunk_kernel(idx_ref, tbl_ref, out_ref):
    """Gather rows of the VMEM-resident table for one chunk of indices.

    idx_ref : (C, 1) int32 VMEM — indices for this chunk (pre-clamped).
    tbl_ref : (V, D)       VMEM — full embedding table, resident across steps.
    out_ref : (C, D)       VMEM — gathered rows (sublane/lane-dense store).
    """
    idx = idx_ref[...]                                    # (C, 1) int32
    zero = jnp.zeros(out_ref.shape, dtype=out_ref.dtype)  # (C, D)

    def body(v, acc):
        row = tbl_ref[pl.ds(v, 1), :]                     # (1, D) dynamic sublane load
        return jnp.where(idx == v, row, acc)              # broadcast -> (C, D)

    out_ref[...] = lax.fori_loop(0, tbl_ref.shape[0], body, zero)


def embedding_gather(emb_table: jax.Array, flat_idx: jax.Array, *,
                     chunk_rows: int = 256,
                     min_pallas_rows: int = 8,
                     max_select_vocab: int = 1024,
                     max_resident_table_bytes: int = 40 * 1024 * 1024) -> jax.Array:
    """Gather rows of `emb_table` ([V, D]) at `flat_idx` ([N]) -> [N, D]."""
    V, D = emb_table.shape
    N = int(flat_idx.shape[0])

    # Bounds handling: PyTorch nn.Embedding raises on OOB; we clamp.
    idx = jnp.clip(flat_idx.astype(jnp.int32), 0, V - 1)

    table_bytes = V * D * emb_table.dtype.itemsize
    if (N < min_pallas_rows
            or V > max_select_vocab
            or table_bytes > max_resident_table_bytes):
        # Tiny problem (launch overhead dominates), vocab too large for the
        # compare-select scan, or table too big to pin in VMEM (v7x: 64 MiB).
        # TODO(synk): manual double-buffered DMA row-gather for huge vocabs.
        return jnp.take(emb_table, idx, axis=0)

    # Chunk of indices handled per grid step (multiple of 8 sublanes).
    C = chunk_rows if N >= chunk_rows else ((N + 7) // 8) * 8
    n_chunks = pl.cdiv(N, C)
    n_pad = n_chunks * C
    if n_pad != N:
        idx = jnp.pad(idx, (0, n_pad - N))                # pad with valid index 0
    idx2d = idx.reshape(n_pad, 1)

    # VMEM budget: resident table + double-buffered index/output blocks + slack.
    needed = table_bytes + 2 * C * (D * emb_table.dtype.itemsize + 4) + (1 << 20)
    vmem_limit = int(max(needed, 32 * 1024 * 1024))

    out = pl.pallas_call(
        _gather_chunk_kernel,
        out_shape=jax.ShapeDtypeStruct((n_pad, D), emb_table.dtype),
        grid=(n_chunks,),
        in_specs=[
            pl.BlockSpec((C, 1), lambda i: (i, 0)),       # index chunk
            pl.BlockSpec((V, D), lambda i: (0, 0)),       # full table, stays resident
        ],
        out_specs=pl.BlockSpec((C, D), lambda i: (i, 0)), # dense (C, 128) store
        compiler_params=pltpu.CompilerParams(
            dimension_semantics=("parallel",),            # independent rows -> both TCs on v7x
            vmem_limit_bytes=vmem_limit,
        ),
    )(idx2d, emb_table)
    return out[:N]


class IDemblayerPallas:
    """JAX/Pallas equivalent of the PyTorch IDemblayer."""

    def __init__(self, num_categories, categ_embed_size, dataset="MIND",
                 text="category", dtype=jnp.float32, key=None):
        if key is None:
            key = jax.random.PRNGKey(0)
        # nn.Embedding default init: N(0, 1).
        # For a purely bandwidth-bound op, dtype=jnp.bfloat16 halves HBM/VMEM
        # traffic; float32 kept as default to match PyTorch parameter dtype.
        self.embedding = jax.random.normal(
            key, (num_categories, categ_embed_size)).astype(dtype)
        self.categ_embed_size = categ_embed_size
        if text == "category":
            if dataset == "MIND":
                self.output_dim = categ_embed_size * 2
            elif dataset == "heybox":
                self.output_dim = categ_embed_size
            else:
                self.output_dim = categ_embed_size
        else:
            self.output_dim = categ_embed_size

    def __call__(self, inputs: jax.Array) -> jax.Array:
        # inputs: integer index array of arbitrary shape (e.g. [B, 2] for MIND).
        flat_idx = inputs.reshape(-1)
        gathered = embedding_gather(self.embedding, flat_idx)    # (N, D)
        # Equivalent of torch .view((-1, output_dim)); cheap row-major reshape.
        return gathered.reshape(-1, self.output_dim)


if __name__ == "__main__":
    key = jax.random.PRNGKey(0)
    k_emb, k_idx = jax.random.split(key)

    num_categories = 32
    categ_embed_size = 128   # lane-dense embedding dim
    batch = 200              # N = 400 indices -> 2 chunks of 256 (exercises padding)

    layer = IDemblayerPallas(num_categories, categ_embed_size,
                             dataset="MIND", text="category", key=k_emb)

    # MIND category inputs: (category_id, subcategory_id) pairs -> shape [B, 2]
    inputs = jax.random.randint(k_idx, (batch, 2), 0, num_categories,
                                dtype=jnp.int32)

    out = jax.block_until_ready(layer(inputs))

    # Reference check in plain JAX (embedding lookup = take). Exact match expected.
    ref = jnp.take(layer.embedding, inputs.reshape(-1), axis=0).reshape(
        -1, layer.output_dim)
    assert out.shape == (batch, categ_embed_size * 2), out.shape
    assert jnp.allclose(out, ref), "mismatch vs reference gather"

    print("KERNEL_OK")
</pallas_src>

<mosaic_0001>
module attributes {stable_mosaic.version = 11 : i64} {
  func.func @_gather_chunk_kernel(%arg0: i32, %arg1: memref<256x1xi32, #tpu.memory_space<vmem>>, %arg2: memref<32x128xf32, #tpu.memory_space<vmem>>, %arg3: memref<256x128xf32, #tpu.memory_space<vmem>>) attributes {dimension_semantics = [#tpu.dimension_semantics<parallel>], iteration_bounds = array<i64: 2>, scalar_prefetch = 0 : i64, scratch_operands = 0 : i64, tpu.core_type = #tpu.core_type<tc>, window_params = [{transform_indices = @transform_0, window_bounds = array<i64: 256, 1>}, {pipeline_mode = #tpu.pipeline_mode<synchronous>, transform_indices = @transform_1, window_bounds = array<i64: 32, 128>}, {transform_indices = @transform_2, window_bounds = array<i64: 256, 128>}]} {
    %c0 = arith.constant 0 : index
    %c0_0 = arith.constant 0 : index
    %0 = vector.load %arg1[%c0, %c0_0] : memref<256x1xi32, #tpu.memory_space<vmem>>, vector<256x1xi32>
    %cst = arith.constant 0.000000e+00 : f32
    %1 = vector.broadcast %cst : f32 to vector<256x128xf32>
    %c0_i32 = arith.constant 0 : i32
    %c32_i32 = arith.constant 32 : i32
    %2 = arith.addi %c0_i32, %c32_i32 : i32
    %c1_i32 = arith.constant 1 : i32
    %3 = scf.for %arg4 = %c0_i32 to %2 step %c1_i32 iter_args(%arg5 = %1) -> (vector<256x128xf32>)  : i32 {
      %5 = arith.index_cast %arg4 : i32 to index
      %c0_4 = arith.constant 0 : index
      %6 = vector.load %arg2[%5, %c0_4] : memref<32x128xf32, #tpu.memory_space<vmem>>, vector<1x128xf32>
      %7 = vector.broadcast %arg4 : i32 to vector<256x1xi32>
      %8 = arith.cmpi eq, %0, %7 : vector<256x1xi32>
      %9 = vector.shape_cast %8 : vector<256x1xi1> to vector<256x1xi1>
      %10 = vector.broadcast %9 : vector<256x1xi1> to vector<256x128xi1>
      %11 = vector.shape_cast %6 : vector<1x128xf32> to vector<1x128xf32>
      %12 = vector.broadcast %11 : vector<1x128xf32> to vector<256x128xf32>
      %13 = arith.select %10, %12, %arg5 : vector<256x128xi1>, vector<256x128xf32>
      scf.yield %13 : vector<256x128xf32>
    }
    %c32_i32_1 = arith.constant 32 : i32
    %c0_2 = arith.constant 0 : index
    %c0_3 = arith.constant 0 : index
    %4 = vector.load %arg3[%c0_2, %c0_3] : memref<256x128xf32, #tpu.memory_space<vmem>>, vector<256x128xf32>
    tpu.vector_store %arg3[%c0_2, %c0_3], %3 {strides = array<i32>} : memref<256x128xf32, #tpu.memory_space<vmem>>, vector<256x128xf32>,
    return
  }
  func.func @transform_0(%arg0: i32) -> (i32, i32) {
    %c0_i32 = arith.constant 0 : i32
    %c0_i32_0 = arith.constant 0 : i32
    return %arg0, %c0_i32 : i32, i32
  }
  func.func @transform_1(%arg0: i32) -> (i32, i32) {
    %c0_i32 = arith.constant 0 : i32
    %c0_i32_0 = arith.constant 0 : i32
    %c0_i32_1 = arith.constant 0 : i32
    return %c0_i32, %c0_i32_0 : i32, i32
  }
  func.func @transform_2(%arg0: i32) -> (i32, i32) {
    %c0_i32 = arith.constant 0 : i32
    %c0_i32_0 = arith.constant 0 : i32
    return %arg0, %c0_i32 : i32, i32
  }
}

</mosaic_0001>

<llo_original>
// kernel: tpu_custom_call.1
$region0: #{tpu_custom_call.1}
  #allocation0 [shape = 'u32[]', space=smem, size = 0x4, offset = 0x4, fixed_abs, tag = 'smem constant byte address 0x4 - core index']
  #allocation1 [shape = 'u32[144,128]{1,0:T(1,128)}', space=vmem, size = 0x12000, scoped, tag = 'internal scratch']
  %s0 = inlined_call_operand.vmem [shape: s32[512,1], index: 0, kind: input, shape index: {}]
  %s1 = inlined_call_operand.vmem [shape: f32[32,128], index: 1, kind: input, shape index: {}]
  %s2 = inlined_call_operand.hbm [shape: f32[512,128], index: 2, kind: output, shape index: {}]
  %s3 = sld [smem:[#allocation0]]
  $region48: #{tpu_custom_call.1} parent=0
    _
  %s5 = ssub.s32 1, %s3
  %s6 = scalar_select 0, %s5, %s3
  $region1: #{tpu_custom_call.1} parent=0
    #allocation2 [shape = 'u8[262144]{0}', space=vmem, size = 0x40000, scoped, tag = 'output window, operand 0']
    #allocation3 [shape = 's32[2]{0}', space=sflag, size = 0x8, scoped, tag = 'scoped memory for tpu_custom_call.1']
    %7 = vsyncpa [#allocation3], 0
    %s8 = scalar_lea.sflag [#allocation3], 1
    %9 = vsyncpa %s8, 0
    loop: start=0, step=1, limit=4
    $region2: #{tpu_custom_call.1} parent=1 // loop_pre_header
      _
    $region3: #{tpu_custom_call.1} parent=1 // loop_header
      %s11 = sphi 0, %s15
      %p12 = scmp.ge.s32.totalorder %s11, 4
      %s21 = sphi 0, %s23
      %s24 = sphi 0, %s21
      %s25 = sphi 0, %s24
      %s41 = sphi 0, %s25
      %s45 = sphi 0, %s45
      %s47 = sphi 0, %s45
      %s48 = sphi 0, %s47
      %s62 = sphi 0, %s48
      %s68 = sphi 0, %s70
      %s71 = sphi 0, %s68
      %s72 = sphi 0, %s71
      %s88 = sphi 0, %s72
    $region4: #{tpu_custom_call.1} parent=1 // loop_header_branch
      %14 = sbr.rel (%p12) target = $region8
    $region5: #{tpu_custom_call.1} parent=1 // loop_body
      %s16 = ssub.s32 %s11, 1
      %s17 = ssub.s32 %s11, 2
      %s18 = sadd.s32 %s11, 1
      %s19 = ssub.s32 %s11, %s18
      %p20 = scmp.eq.s32.totalorder %s19, 0
      %s22 = sadd.s32 %s21, 1
      %s23 = scalar_select %p20, %s21, %s22
      %p26 = pneg %p20
      %p27 = scmp.eq.s32.totalorder %s11, 1
      %p28 = por %p26, %p27
      %p29 = scmp.ne.s32.totalorder %s21, %s24
      %p30 = scmp.eq.s32.totalorder %s11, 0
      %p31 = por %p29, %p30
      %p32 = scmp.ne.s32.totalorder %s21, %s24
      %p33 = scmp.eq.s32.totalorder %s16, 1
      %p34 = por %p32, %p33
      %p35 = scmp.ne.s32.totalorder %s24, %s25
      %p36 = scmp.eq.s32.totalorder %s16, 0
      %p37 = por %p35, %p36
      %p38 = scmp.ne.s32.totalorder %s24, %s25
      %p39 = scmp.eq.s32.totalorder %s17, 1
      %p40 = por %p38, %p39
      %p42 = scmp.ne.s32.totalorder %s25, %s41
      %p43 = scmp.eq.s32.totalorder %s17, 0
      %p44 = por %p42, %p43
      %s46 = sadd.s32 %s45, 1
      %p49 = scmp.eq.s32.totalorder %s11, 1
      %p50 = scmp.ne.s32.totalorder %s45, %s47
      %p51 = scmp.eq.s32.totalorder %s11, 0
      %p52 = por %p50, %p51
      %p53 = scmp.ne.s32.totalorder %s45, %s47
      %p54 = scmp.eq.s32.totalorder %s16, 1
      %p55 = por %p53, %p54
      %p56 = scmp.ne.s32.totalorder %s47, %s48
      %p57 = scmp.eq.s32.totalorder %s16, 0
      %p58 = por %p56, %p57
      %p59 = scmp.ne.s32.totalorder %s47, %s48
      %p60 = scmp.eq.s32.totalorder %s17, 1
      %p61 = por %p59, %p60
      %p63 = scmp.ne.s32.totalorder %s48, %s62
      %p64 = scmp.eq.s32.totalorder %s17, 0
      %p65 = por %p63, %p64
      %s66 = ssub.s32 %s11, %s18
      %p67 = scmp.eq.s32.totalorder %s66, 0
      %s69 = sadd.s32 %s68, 1
      %s70 = scalar_select %p67, %s68, %s69
      %p73 = pneg %p67
      %p74 = scmp.eq.s32.totalorder %s11, 1
      %p75 = por %p73, %p74
      %p76 = scmp.ne.s32.totalorder %s68, %s71
      %p77 = scmp.eq.s32.totalorder %s11, 0
      %p78 = por %p76, %p77
      %p79 = scmp.ne.s32.totalorder %s68, %s71
      %p80 = scmp.eq.s32.totalorder %s16, 1
      %p81 = por %p79, %p80
      %p82 = scmp.ne.s32.totalorder %s71, %s72
      %p83 = scmp.eq.s32.totalorder %s16, 0
      %p84 = por %p82, %p83
      %p85 = scmp.ne.s32.totalorder %s71, %s72
      %p86 = scmp.eq.s32.totalorder %s17, 1
      %p87 = por %p85, %p86
      %p89 = scmp.ne.s32.totalorder %s72, %s88
      %p90 = scmp.eq.s32.totalorder %s17, 0
      %p91 = por %p89, %p90
      %p92 = scmp.le.s32.totalorder 1, %s11
      %p93 = scmp.lt.s32.totalorder %s11, 3
      %p94 = pnand %p92, %p93
      %p95 = pneg %p94
      // Predicated region
      $region9: #{tpu_custom_call.1} parent=5 // pred_check
        _
      $region10: #{tpu_custom_call.1} parent=5 // pred_check_branch
        %97 = sbr.rel (%p94) target = $region12
      $region11: #{tpu_custom_call.1} parent=5 // pred_region
        %s98 = ssub.s32 %s11, 1
        // Predicated region
        $region13: #{tpu_custom_call.1} parent=11 // pred_check
          %p99 = pneg %p58
        $region14: #{tpu_custom_call.1} parent=11 // pred_check_branch
          %101 = sbr.rel (%p99) target = $region16
        $region15: #{tpu_custom_call.1} parent=11 // pred_region
          _
        $region16: #{tpu_custom_call.1} parent=11 // pred_fallthru
          _
      $region12: #{tpu_custom_call.1} parent=5 // pred_fallthru
        _
      %p102 = scmp.lt.s32.totalorder %s11, 2
      // Predicated region
      $region17: #{tpu_custom_call.1} parent=5 // pred_check
        %p103 = pneg %p102
      $region18: #{tpu_custom_call.1} parent=5 // pred_check_branch
        %105 = sbr.rel (%p103) target = $region20
      $region19: #{tpu_custom_call.1} parent=5 // pred_region
        // Predicated region
        $region21: #{tpu_custom_call.1} parent=19 // pred_check
          %p106 = pneg %p31
        $region22: #{tpu_custom_call.1} parent=19 // pred_check_branch
          %108 = sbr.rel (%p106) target = $region24
        $region23: #{tpu_custom_call.1} parent=19 // pred_region
          %s109 = smul.u32 32, %s11
          %p110 = scmp.lt.s32.totalorder %s109, 63
          %s111 = scalar_select %p110, %s109, 63
          %s112 = smul.addr %s111, 8
          %s113 = scalar_lea.vmem %s0, %s112
          %s114 = smul.u32 32, %s11
        $region24: #{tpu_custom_call.1} parent=19 // pred_fallthru
          _
      $region20: #{tpu_custom_call.1} parent=5 // pred_fallthru
        _
      %p115 = scmp.le.s32.totalorder 1, %s11
      %p116 = scmp.lt.s32.totalorder %s11, 3
      %p117 = pnand %p115, %p116
      %p118 = pneg %p117
      // Predicated region
      $region25: #{tpu_custom_call.1} parent=5 // pred_check
        _
      $region26: #{tpu_custom_call.1} parent=5 // pred_check_branch
        %120 = sbr.rel (%p117) target = $region28
      $region27: #{tpu_custom_call.1} parent=5 // pred_region
        %s121 = ssub.s32 %s11, 1
        %s122 = smul.u32 32, %s16
        %p123 = scmp.lt.s32.totalorder %s122, 63
        %s124 = scalar_select %p123, %s122, 63
        %s125 = smul.addr %s124, 8
        %s126 = scalar_lea.vmem %s0, %s125
        %p127 = pneg %p37
        %p128 = pneg %p34
        %p129 = pneg %p58
        %p130 = pneg %p55
        %p131 = pneg %p84
        %p132 = pneg %p81
        %s133 = sand.u32 %s71, 1
        %s134 = scalar_lea.sflag [#allocation3], %s133
        %s135 = sand.u32 %s71, 1
        %s136 = smul.addr %s135, 256
        %s137 = scalar_lea.vmem [#allocation2], %s136
        %s138 = smul.u32 32, %s16
        %p139 = scmp.lt.s32.totalorder %s138, 63
        %s140 = scalar_select %p139, %s138, 63
        %s141 = smul.addr %s140, 8
        %s142 = scalar_lea.vmem %s0, %s141
        %s143 = smul.u32 32, %s16
        %s144 = smul.u32 32, %s16
        %v145 = vld [vmem:[%s142] sm:$0xff]
        %v146 = vld [vmem:[%s142 + $0x8] sm:$0xff]
        %v147 = vld [vmem:[%s142 + $0x10] sm:$0xff]
        %v148 = vld [vmem:[%s142 + $0x18] sm:$0xff]
        %v149 = vld [vmem:[%s142 + $0x20] sm:$0xff]
        %v150 = vld [vmem:[%s142 + $0x28] sm:$0xff]
        %v151 = vld [vmem:[%s142 + $0x30] sm:$0xff]
        %v152 = vld [vmem:[%s142 + $0x38] sm:$0xff]
        %v153 = vld [vmem:[%s142 + $0x40] sm:$0xff]
        %v154 = vld [vmem:[%s142 + $0x48] sm:$0xff]
        %v155 = vld [vmem:[%s142 + $0x50] sm:$0xff]
        %v156 = vld [vmem:[%s142 + $0x58] sm:$0xff]
        %v157 = vld [vmem:[%s142 + $0x60] sm:$0xff]
        %v158 = vld [vmem:[%s142 + $0x68] sm:$0xff]
        %v159 = vld [vmem:[%s142 + $0x70] sm:$0xff]
        %v160 = vld [vmem:[%s142 + $0x78] sm:$0xff]
        %v161 = vld [vmem:[%s142 + $0x80] sm:$0xff]
        %v162 = vld [vmem:[%s142 + $0x88] sm:$0xff]
        %v163 = vld [vmem:[%s142 + $0x90] sm:$0xff]
        %v164 = vld [vmem:[%s142 + $0x98] sm:$0xff]
        %v165 = vld [vmem:[%s142 + $0xa0] sm:$0xff]
        %v166 = vld [vmem:[%s142 + $0xa8] sm:$0xff]
        %v167 = vld [vmem:[%s142 + $0xb0] sm:$0xff]
        %v168 = vld [vmem:[%s142 + $0xb8] sm:$0xff]
        %v169 = vld [vmem:[%s142 + $0xc0] sm:$0xff]
        %v170 = vld [vmem:[%s142 + $0xc8] sm:$0xff]
        %v171 = vld [vmem:[%s142 + $0xd0] sm:$0xff]
        %v172 = vld [vmem:[%s142 + $0xd8] sm:$0xff]
        %v173 = vld [vmem:[%s142 + $0xe0] sm:$0xff]
        %v174 = vld [vmem:[%s142 + $0xe8] sm:$0xff]
        %v175 = vld [vmem:[%s142 + $0xf0] sm:$0xff]
        %v176 = vld [vmem:[%s142 + $0xf8] sm:$0xff]
        loop: start=0, step=1, limit=32
        $region29: #{tpu_custom_call.1} parent=27 // loop_pre_header
          _
        $region30: #{tpu_custom_call.1} parent=27 // loop_header
          %s178 = sphi 0, %s182
          %p179 = scmp.ge.s32.totalorder %s178, 32
          %v183 = vphi 0.0, %v414
          %v184 = vphi 0.0, %v415
          %v185 = vphi 0.0, %v416
          %v186 = vphi 0.0, %v417
          %v187 = vphi 0.0, %v418
          %v188 = vphi 0.0, %v419
          %v189 = vphi 0.0, %v420
          %v190 = vphi 0.0, %v421
          %v191 = vphi 0.0, %v422
          %v192 = vphi 0.0, %v423
          %v193 = vphi 0.0, %v424
          %v194 = vphi 0.0, %v425
          %v195 = vphi 0.0, %v426
          %v196 = vphi 0.0, %v427
          %v197 = vphi 0.0, %v428
          %v198 = vphi 0.0, %v429
          %v199 = vphi 0.0, %v430
          %v200 = vphi 0.0, %v431
          %v201 = vphi 0.0, %v432
          %v202 = vphi 0.0, %v433
          %v203 = vphi 0.0, %v434
          %v204 = vphi 0.0, %v435
          %v205 = vphi 0.0, %v436
          %v206 = vphi 0.0, %v437
          %v207 = vphi 0.0, %v438
          %v208 = vphi 0.0, %v439
          %v209 = vphi 0.0, %v440
          %v210 = vphi 0.0, %v441
          %v211 = vphi 0.0, %v442
          %v212 = vphi 0.0, %v443
          %v213 = vphi 0.0, %v444
          %v214 = vphi 0.0, %v445
        $region31: #{tpu_custom_call.1} parent=27 // loop_header_branch
          %181 = sbr.rel (%p179) target = $region35
        $region32: #{tpu_custom_call.1} parent=27 // loop_body
          %s215 = scalar_lea.vmem %s1, %s178
          %v216 = vld [vmem:[%s215] sm:$0x1]
          %v217 = vstv %s178
          %vm218 = vcmp.eq.s32.totalorder %v145, %v217
          %vm219 = vcmp.eq.s32.totalorder %v146, %v217
          %vm220 = vcmp.eq.s32.totalorder %v147, %v217
          %vm221 = vcmp.eq.s32.totalorder %v148, %v217
          %vm222 = vcmp.eq.s32.totalorder %v149, %v217
          %vm223 = vcmp.eq.s32.totalorder %v150, %v217
          %vm224 = vcmp.eq.s32.totalorder %v151, %v217
          %vm225 = vcmp.eq.s32.totalorder %v152, %v217
          %vm226 = vcmp.eq.s32.totalorder %v153, %v217
          %vm227 = vcmp.eq.s32.totalorder %v154, %v217
          %vm228 = vcmp.eq.s32.totalorder %v155, %v217
          %vm229 = vcmp.eq.s32.totalorder %v156, %v217
          %vm230 = vcmp.eq.s32.totalorder %v157, %v217
          %vm231 = vcmp.eq.s32.totalorder %v158, %v217
          %vm232 = vcmp.eq.s32.totalorder %v159, %v217
          %vm233 = vcmp.eq.s32.totalorder %v160, %v217
          %vm234 = vcmp.eq.s32.totalorder %v161, %v217
          %vm235 = vcmp.eq.s32.totalorder %v162, %v217
          %vm236 = vcmp.eq.s32.totalorder %v163, %v217
          %vm237 = vcmp.eq.s32.totalorder %v164, %v217
          %vm238 = vcmp.eq.s32.totalorder %v165, %v217
          %vm239 = vcmp.eq.s32.totalorder %v166, %v217
          %vm240 = vcmp.eq.s32.totalorder %v167, %v217
          %vm241 = vcmp.eq.s32.totalorder %v168, %v217
          %vm242 = vcmp.eq.s32.totalorder %v169, %v217
          %vm243 = vcmp.eq.s32.totalorder %v170, %v217
          %vm244 = vcmp.eq.s32.totalorder %v171, %v217
          %vm245 = vcmp.eq.s32.totalorder %v172, %v217
          %vm246 = vcmp.eq.s32.totalorder %v173, %v217
          %vm247 = vcmp.eq.s32.totalorder %v174, %v217
          %vm248 = vcmp.eq.s32.totalorder %v175, %v217
          %vm249 = vcmp.eq.s32.totalorder %v176, %v217
          %v250 = vsel %vm218, 1, 0
          %v251 = vsel %vm219, 1, 0
          %v252 = vsel %vm220, 1, 0
          %v253 = vsel %vm221, 1, 0
          %v254 = vsel %vm222, 1, 0
          %v255 = vsel %vm223, 1, 0
          %v256 = vsel %vm224, 1, 0
          %v257 = vsel %vm225, 1, 0
          %v258 = vsel %vm226, 1, 0
          %v259 = vsel %vm227, 1, 0
          %v260 = vsel %vm228, 1, 0
          %v261 = vsel %vm229, 1, 0
          %v262 = vsel %vm230, 1, 0
          %v263 = vsel %vm231, 1, 0
          %v264 = vsel %vm232, 1, 0
          %v265 = vsel %vm233, 1, 0
          %v266 = vsel %vm234, 1, 0
          %v267 = vsel %vm235, 1, 0
          %v268 = vsel %vm236, 1, 0
          %v269 = vsel %vm237, 1, 0
          %v270 = vsel %vm238, 1, 0
          %v271 = vsel %vm239, 1, 0
          %v272 = vsel %vm240, 1, 0
          %v273 = vsel %vm241, 1, 0
          %v274 = vsel %vm242, 1, 0
          %v275 = vsel %vm243, 1, 0
          %v276 = vsel %vm244, 1, 0
          %v277 = vsel %vm245, 1, 0
          %v278 = vsel %vm246, 1, 0
          %v279 = vsel %vm247, 1, 0
          %v280 = vsel %vm248, 1, 0
          %v281 = vsel %vm249, 1, 0
          %282 = vset.pattern.permute.xlu0 0
          %283 = vperm.xlu0 %282, %v250
          %v284 = vpop.permute.xlu0 %283
          %285 = vset.pattern.permute.xlu0 0
          %286 = vperm.xlu0 %285, %v251
          %v287 = vpop.permute.xlu0 %286
          %288 = vset.pattern.permute.xlu0 0
          %289 = vperm.xlu0 %288, %v252
          %v290 = vpop.permute.xlu0 %289
          %291 = vset.pattern.permute.xlu0 0
          %292 = vperm.xlu0 %291, %v253
          %v293 = vpop.permute.xlu0 %292
          %294 = vset.pattern.permute.xlu0 0
          %295 = vperm.xlu0 %294, %v254
          %v296 = vpop.permute.xlu0 %295
          %297 = vset.pattern.permute.xlu0 0
          %298 = vperm.xlu0 %297, %v255
          %v299 = vpop.permute.xlu0 %298
          %300 = vset.pattern.permute.xlu0 0
          %301 = vperm.xlu0 %300, %v256
          %v302 = vpop.permute.xlu0 %301
          %303 = vset.pattern.permute.xlu0 0
          %304 = vperm.xlu0 %303, %v257
          %v305 = vpop.permute.xlu0 %304
          %306 = vset.pattern.permute.xlu0 0
          %307 = vperm.xlu0 %306, %v258
          %v308 = vpop.permute.xlu0 %307
          %309 = vset.pattern.permute.xlu0 0
          %310 = vperm.xlu0 %309, %v259
          %v311 = vpop.permute.xlu0 %310
          %312 = vset.pattern.permute.xlu0 0
          %313 = vperm.xlu0 %312, %v260
          %v314 = vpop.permute.xlu0 %313
          %315 = vset.pattern.permute.xlu0 0
          %316 = vperm.xlu0 %315, %v261
          %v317 = vpop.permute.xlu0 %316
          %318 = vset.pattern.permute.xlu0 0
          %319 = vperm.xlu0 %318, %v262
          %v320 = vpop.permute.xlu0 %319
          %321 = vset.pattern.permute.xlu0 0
          %322 = vperm.xlu0 %321, %v263
          %v323 = vpop.permute.xlu0 %322
          %324 = vset.pattern.permute.xlu0 0
          %325 = vperm.xlu0 %324, %v264
          %v326 = vpop.permute.xlu0 %325
          %327 = vset.pattern.permute.xlu0 0
          %328 = vperm.xlu0 %327, %v265
          %v329 = vpop.permute.xlu0 %328
          %330 = vset.pattern.permute.xlu0 0
          %331 = vperm.xlu0 %330, %v266
          %v332 = vpop.permute.xlu0 %331
          %333 = vset.pattern.permute.xlu0 0
          %334 = vperm.xlu0 %333, %v267
          %v335 = vpop.permute.xlu0 %334
          %336 = vset.pattern.permute.xlu0 0
          %337 = vperm.xlu0 %336, %v268
          %v338 = vpop.permute.xlu0 %337
          %339 = vset.pattern.permute.xlu0 0
          %340 = vperm.xlu0 %339, %v269
          %v341 = vpop.permute.xlu0 %340
          %342 = vset.pattern.permute.xlu0 0
          %343 = vperm.xlu0 %342, %v270
          %v344 = vpop.permute.xlu0 %343
          %345 = vset.pattern.permute.xlu0 0
          %346 = vperm.xlu0 %345, %v271
          %v347 = vpop.permute.xlu0 %346
          %348 = vset.pattern.permute.xlu0 0
          %349 = vperm.xlu0 %348, %v272
          %v350 = vpop.permute.xlu0 %349
          %351 = vset.pattern.permute.xlu0 0
          %352 = vperm.xlu0 %351, %v273
          %v353 = vpop.permute.xlu0 %352
          %354 = vset.pattern.permute.xlu0 0
          %355 = vperm.xlu0 %354, %v274
          %v356 = vpop.permute.xlu0 %355
          %357 = vset.pattern.permute.xlu0 0
          %358 = vperm.xlu0 %357, %v275
          %v359 = vpop.permute.xlu0 %358
          %360 = vset.pattern.permute.xlu0 0
          %361 = vperm.xlu0 %360, %v276
          %v362 = vpop.permute.xlu0 %361
          %363 = vset.pattern.permute.xlu0 0
          %364 = vperm.xlu0 %363, %v277
          %v365 = vpop.permute.xlu0 %364
          %366 = vset.pattern.permute.xlu0 0
          %367 = vperm.xlu0 %366, %v278
          %v368 = vpop.permute.xlu0 %367
          %369 = vset.pattern.permute.xlu0 0
          %370 = vperm.xlu0 %369, %v279
          %v371 = vpop.permute.xlu0 %370
          %372 = vset.pattern.permute.xlu0 0
          %373 = vperm.xlu0 %372, %v280
          %v374 = vpop.permute.xlu0 %373
          %375 = vset.pattern.permute.xlu0 0
          %376 = vperm.xlu0 %375, %v281
          %v377 = vpop.permute.xlu0 %376
          %vm378 = vcmp.eq.s32.totalorder %v284, 1
          %vm379 = vcmp.eq.s32.totalorder %v287, 1
          %vm380 = vcmp.eq.s32.totalorder %v290, 1
          %vm381 = vcmp.eq.s32.totalorder %v293, 1
          %vm382 = vcmp.eq.s32.totalorder %v296, 1
          %vm383 = vcmp.eq.s32.totalorder %v299, 1
          %vm384 = vcmp.eq.s32.totalorder %v302, 1
          %vm385 = vcmp.eq.s32.totalorder %v305, 1
          %vm386 = vcmp.eq.s32.totalorder %v308, 1
          %vm387 = vcmp.eq.s32.totalorder %v311, 1
          %vm388 = vcmp.eq.s32.totalorder %v314, 1
          %vm389 = vcmp.eq.s32.totalorder %v317, 1
          %vm390 = vcmp.eq.s32.totalorder %v320, 1
          %vm391 = vcmp.eq.s32.totalorder %v323, 1
          %vm392 = vcmp.eq.s32.totalorder %v326, 1
          %vm393 = vcmp.eq.s32.totalorder %v329, 1
          %vm394 = vcmp.eq.s32.totalorder %v332, 1
          %vm395 = vcmp.eq.s32.totalorder %v335, 1
          %vm396 = vcmp.eq.s32.totalorder %v338, 1
          %vm397 = vcmp.eq.s32.totalorder %v341, 1
          %vm398 = vcmp.eq.s32.totalorder %v344, 1
          %vm399 = vcmp.eq.s32.totalorder %v347, 1
          %vm400 = vcmp.eq.s32.totalorder %v350, 1
          %vm401 = vcmp.eq.s32.totalorder %v353, 1
          %vm402 = vcmp.eq.s32.totalorder %v356, 1
          %vm403 = vcmp.eq.s32.totalorder %v359, 1
          %vm404 = vcmp.eq.s32.totalorder %v362, 1
          %vm405 = vcmp.eq.s32.totalorder %v365, 1
          %vm406 = vcmp.eq.s32.totalorder %v368, 1
          %vm407 = vcmp.eq.s32.totalorder %v371, 1
          %vm408 = vcmp.eq.s32.totalorder %v374, 1
          %vm409 = vcmp.eq.s32.totalorder %v377, 1
          %v410 = vlaneseq
          %v411 = vshrl.u32 %v410, 7
          %v412 = vsub.s32 0, %v411
          %v413 = vrot.slane %v216, %v412
          %v414 = vsel %vm378, %v413, %v183
          %v415 = vsel %vm379, %v413, %v184
          %v416 = vsel %vm380, %v413, %v185
          %v417 = vsel %vm381, %v413, %v186
          %v418 = vsel %vm382, %v413, %v187
          %v419 = vsel %vm383, %v413, %v188
          %v420 = vsel %vm384, %v413, %v189
          %v421 = vsel %vm385, %v413, %v190
          %v422 = vsel %vm386, %v413, %v191
          %v423 = vsel %vm387, %v413, %v192
          %v424 = vsel %vm388, %v413, %v193
          %v425 = vsel %vm389, %v413, %v194
          %v426 = vsel %vm390, %v413, %v195
          %v427 = vsel %vm391, %v413, %v196
          %v428 = vsel %vm392, %v413, %v197
          %v429 = vsel %vm393, %v413, %v198
          %v430 = vsel %vm394, %v413, %v199
          %v431 = vsel %vm395, %v413, %v200
          %v432 = vsel %vm396, %v413, %v201
          %v433 = vsel %vm397, %v413, %v202
          %v434 = vsel %vm398, %v413, %v203
          %v435 = vsel %vm399, %v413, %v204
          %v436 = vsel %vm400, %v413, %v205
          %v437 = vsel %vm401, %v413, %v206
          %v438 = vsel %vm402, %v413, %v207
          %v439 = vsel %vm403, %v413, %v208
          %v440 = vsel %vm404, %v413, %v209
          %v441 = vsel %vm405, %v413, %v210
          %v442 = vsel %vm406, %v413, %v211
          %v443 = vsel %vm407, %v413, %v212
          %v444 = vsel %vm408, %v413, %v213
          %v445 = vsel %vm409, %v413, %v214
        $region33: #{tpu_custom_call.1} parent=27 // loop_footer
          %s182 = sadd.s32 1, %s178
        $region34: #{tpu_custom_call.1} parent=27 // loop_footer_branch
          %177 = sbr.rel target = $region30
        $region35: #{tpu_custom_call.1} parent=27 // loop_exit
          _
        %446 = vst [vmem:[%s137] sm:$0xff] %v183
        %447 = vst [vmem:[%s137 + $0x8] sm:$0xff] %v184
        %448 = vst [vmem:[%s137 + $0x10] sm:$0xff] %v185
        %449 = vst [vmem:[%s137 + $0x18] sm:$0xff] %v186
        %450 = vst [vmem:[%s137 + $0x20] sm:$0xff] %v187
        %451 = vst [vmem:[%s137 + $0x28] sm:$0xff] %v188
        %452 = vst [vmem:[%s137 + $0x30] sm:$0xff] %v189
        %453 = vst [vmem:[%s137 + $0x38] sm:$0xff] %v190
        %454 = vst [vmem:[%s137 + $0x40] sm:$0xff] %v191
        %455 = vst [vmem:[%s137 + $0x48] sm:$0xff] %v192
        %456 = vst [vmem:[%s137 + $0x50] sm:$0xff] %v193
        %457 = vst [vmem:[%s137 + $0x58] sm:$0xff] %v194
        %458 = vst [vmem:[%s137 + $0x60] sm:$0xff] %v195
        %459 = vst [vmem:[%s137 + $0x68] sm:$0xff] %v196
        %460 = vst [vmem:[%s137 + $0x70] sm:$0xff] %v197
        %461 = vst [vmem:[%s137 + $0x78] sm:$0xff] %v198
        %462 = vst [vmem:[%s137 + $0x80] sm:$0xff] %v199
        %463 = vst [vmem:[%s137 + $0x88] sm:$0xff] %v200
        %464 = vst [vmem:[%s137 + $0x90] sm:$0xff] %v201
        %465 = vst [vmem:[%s137 + $0x98] sm:$0xff] %v202
        %466 = vst [vmem:[%s137 + $0xa0] sm:$0xff] %v203
        %467 = vst [vmem:[%s137 + $0xa8] sm:$0xff] %v204
        %468 = vst [vmem:[%s137 + $0xb0] sm:$0xff] %v205
        %469 = vst [vmem:[%s137 + $0xb8] sm:$0xff] %v206
        %470 = vst [vmem:[%s137 + $0xc0] sm:$0xff] %v207
        %471 = vst [vmem:[%s137 + $0xc8] sm:$0xff] %v208
        %472 = vst [vmem:[%s137 + $0xd0] sm:$0xff] %v209
        %473 = vst [vmem:[%s137 + $0xd8] sm:$0xff] %v210
        %474 = vst [vmem:[%s137 + $0xe0] sm:$0xff] %v211
        %475 = vst [vmem:[%s137 + $0xe8] sm:$0xff] %v212
        %476 = vst [vmem:[%s137 + $0xf0] sm:$0xff] %v213
        %477 = vst [vmem:[%s137 + $0xf8] sm:$0xff] %v214
        %s478 = sand.u32 %s71, 1
        %s479 = scalar_lea.sflag [#allocation3], %s478
        %s480 = sand.u32 %s71, 1
        %s481 = smul.addr %s480, 256
        %s482 = scalar_lea.vmem [#allocation2], %s481
        // Predicated region
        $region36: #{tpu_custom_call.1} parent=27 // pred_check
          %p483 = pneg %p81
        $region37: #{tpu_custom_call.1} parent=27 // pred_check_branch
          %485 = sbr.rel (%p483) target = $region39
        $region38: #{tpu_custom_call.1} parent=27 // pred_region
          %s486 = smul.u32 32, %s16
          %s488 = ssub.s32 4096, 4096
          %489 = vsyncadd %s479, %s488
          %s490 = smul.addr %s486, 128
          %s491 = scalar_lea.hbm %s2, %s490
          %s492 = sshll.u32 %s482, 4
          %s493 = int_to_ptr.vmem [resolvable:$true] %s492
          %498 = dma.vmem_to_hbm [thread:$0]  %s493, 4096, %s491, %s479, 128, 128, 8
        $region39: #{tpu_custom_call.1} parent=27 // pred_fallthru
          _
      $region28: #{tpu_custom_call.1} parent=5 // pred_fallthru
        _
      %p499 = scmp.le.s32.totalorder 2, %s11
      // Predicated region
      $region40: #{tpu_custom_call.1} parent=5 // pred_check
        %p500 = pneg %p499
      $region41: #{tpu_custom_call.1} parent=5 // pred_check_branch
        %502 = sbr.rel (%p500) target = $region43
      $region42: #{tpu_custom_call.1} parent=5 // pred_region
        %s503 = ssub.s32 %s11, 2
        // Predicated region
        $region44: #{tpu_custom_call.1} parent=42 // pred_check
          %p504 = pneg %p87
        $region45: #{tpu_custom_call.1} parent=42 // pred_check_branch
          %506 = sbr.rel (%p504) target = $region47
        $region46: #{tpu_custom_call.1} parent=42 // pred_region
          %s507 = sand.u32 %s72, 1
          %s508 = scalar_lea.sflag [#allocation3], %s507
          %s509 = sand.u32 %s72, 1
          %s510 = smul.addr %s509, 256
          %s511 = scalar_lea.vmem [#allocation2], %s510
          %512 = dma.done %s508, 4096
        $region47: #{tpu_custom_call.1} parent=42 // pred_fallthru
          _
      $region43: #{tpu_custom_call.1} parent=5 // pred_fallthru
        _
    $region6: #{tpu_custom_call.1} parent=1 // loop_footer
      %s15 = sadd.s32 1, %s11
    $region7: #{tpu_custom_call.1} parent=1 // loop_footer_branch
      %10 = sbr.rel target = $region3
    $region8: #{tpu_custom_call.1} parent=1 // loop_exit
      _
    %513 = vsyncpa [#allocation3], 1
    %s514 = scalar_lea.sflag [#allocation3], 1
    %515 = vsyncpa %s514, 1

</llo_original>
